<compile_context>
chip_gen: v6e
topology: v6e:2x2x1
jax: 0.10.0
libtpu: 0.0.40
codegen_flags: <defaults>
</compile_context>

<pallas_src>
import math
import jax
import jax.numpy as jnp
from jax.experimental import pallas as pl
from jax.experimental.pallas import tpu as pltpu


def channel_mix_kernel(x_ref, xs_ref, xk_ref, wk_ref, wv_ref, o_ref,
                       k_ref, acc_ref):
    """Grid = (token_tiles, hidden_tiles); hidden axis is the reduction."""
    h_idx = pl.program_id(1)

    @pl.when(h_idx == 0)
    def _init():
        # Compute the mixed key tile once per token tile, reuse across h slabs.
        x = x_ref[...]                         # (tm, C) f32
        xs = xs_ref[...]                       # (tm, C) f32 (time-shifted x)
        xk = xk_ref[...]                       # (1, C) broadcasts over rows
        k = x + (xs - x) * xk
        k_ref[...] = k.astype(k_ref.dtype)     # bf16 MXU operand
        acc_ref[...] = jnp.zeros_like(acc_ref)

    # h = relu(k @ Wk_slab)^2  -> (tm, th), f32 accumulation on the MXU
    h = jnp.dot(k_ref[...], wk_ref[...], preferred_element_type=jnp.float32)
    h = jnp.maximum(h, 0.0)
    h = h * h
    # Partial contribution of this hidden slab to the output.
    acc_ref[...] += jnp.dot(h.astype(wv_ref.dtype), wv_ref[...],
                            preferred_element_type=jnp.float32)

    @pl.when(h_idx == pl.num_programs(1) - 1)
    def _store():
        o_ref[...] = acc_ref[...].astype(o_ref.dtype)


def _round_up(v, m):
    return (v + m - 1) // m * m


def _pick_token_tile(m_tokens, preferred=256):
    # 256 rows feeds the 256-wide MXU (v6e/v7x) and amortizes weight DMAs;
    # for tiny inputs use a single multiple-of-8 tile.
    if m_tokens >= preferred:
        return preferred
    return _round_up(max(m_tokens, 8), 8)


def _pick_hidden_tile(hidden):
    for cand in (512, 256, 128):
        if hidden % cand == 0:
            return cand
    return hidden  # small toy sizes: one full (lane-legal) slab


def channel_mix(x, x_k, w_k, w_v, *, tm=None, th=None):
    """x: (B, T, C) f32; x_k: (1, C); w_k: (C, 4C) bf16; w_v: (4C, C) bf16."""
    B, T, C = x.shape
    H = w_k.shape[1]
    assert w_k.shape == (C, H) and w_v.shape == (H, C) and x_k.shape == (1, C)

    # Time shift in the wrapper: shifted[t] = x[t-1], shifted[0] = 0 (per batch).
    shifted = jnp.concatenate([jnp.zeros_like(x[:, :1, :]), x[:, :-1, :]], axis=1)

    M = B * T
    x2 = x.reshape(M, C)
    s2 = shifted.reshape(M, C)

    if tm is None:
        tm = _pick_token_tile(M)
    if th is None:
        th = _pick_hidden_tile(H)

    Mp = _round_up(M, tm)
    if Mp != M:
        pad = ((0, Mp - M), (0, 0))
        x2 = jnp.pad(x2, pad)     # padded rows produce zeros; sliced off below
        s2 = jnp.pad(s2, pad)

    n_m = Mp // tm
    n_h = H // th

    cost = pl.CostEstimate(
        flops=4 * Mp * C * H,
        transcendentals=0,
        bytes_accessed=(3 * Mp * C * x.dtype.itemsize          # x, shifted, out
                        + n_m * 2 * C * H * w_k.dtype.itemsize),  # weight stream
    )

    out = pl.pallas_call(
        channel_mix_kernel,
        out_shape=jax.ShapeDtypeStruct((Mp, C), x.dtype),
        grid_spec=pltpu.PrefetchScalarGridSpec(
            num_scalar_prefetch=0,
            grid=(n_m, n_h),
            in_specs=[
                pl.BlockSpec((tm, C), lambda m, h: (m, 0)),   # x tile
                pl.BlockSpec((tm, C), lambda m, h: (m, 0)),   # shifted tile
                pl.BlockSpec((1, C), lambda m, h: (0, 0)),    # x_k (broadcast)
                pl.BlockSpec((C, th), lambda m, h: (0, h)),   # W_k slab
                pl.BlockSpec((th, C), lambda m, h: (h, 0)),   # W_v slab
            ],
            out_specs=pl.BlockSpec((tm, C), lambda m, h: (m, 0)),
            scratch_shapes=[
                pltpu.VMEM((tm, C), jnp.bfloat16),   # k operand, reused over h
                pltpu.VMEM((tm, C), jnp.float32),    # output accumulator
            ],
        ),
        compiler_params=pltpu.CompilerParams(
            dimension_semantics=("parallel", "arbitrary"),
            vmem_limit_bytes=48 * 1024 * 1024,   # fits v7x 64 MiB physical
        ),
        cost_estimate=cost,
    )(x2, s2, x_k, w_k, w_v)

    return out[:M].reshape(B, T, C)


def channel_mix_ref(x, x_k, w_k, w_v):
    """Pure-JAX reference mirroring the PyTorch forward (f32 math)."""
    shifted = jnp.pad(x, ((0, 0), (1, 0), (0, 0)))[:, :-1, :]
    k = x + (shifted - x) * x_k[None, :, :]
    h = jnp.maximum(jnp.einsum("btc,ch->bth", k, w_k.astype(jnp.float32)), 0.0) ** 2
    return jnp.einsum("bth,hc->btc", h, w_v.astype(jnp.float32))


def make_params(embed_dim, n_layer, layer_id, key):
    """Deterministic parameter construction mirroring ChannelMix.__init__."""
    ratio_1_to_almost0 = 1.0 - layer_id / n_layer
    ddd = jnp.arange(embed_dim, dtype=jnp.float32) / embed_dim
    x_k = (1.0 - jnp.power(ddd, ratio_1_to_almost0 ** 4)).reshape(1, embed_dim)

    k_wk, k_wv = jax.random.split(key)
    bound = 0.5 / math.sqrt(embed_dim)
    # PyTorch Linear stores (out, in); pre-transposed to (in, out) so the
    # kernel computes k @ W directly. Stored in bf16 for MXU throughput.
    w_k = jax.random.uniform(k_wk, (embed_dim, 4 * embed_dim),
                             minval=-bound, maxval=bound,
                             dtype=jnp.float32).astype(jnp.bfloat16)
    # NOTE: the PyTorch module zero-initializes W_v (output would be all-zero);
    # we use a deterministic uniform init so the numerical check is non-trivial.
    # Forward semantics are unchanged.
    w_v = jax.random.uniform(k_wv, (4 * embed_dim, embed_dim),
                             minval=-bound, maxval=bound,
                             dtype=jnp.float32).astype(jnp.bfloat16)
    return x_k, w_k, w_v


if __name__ == "__main__":
    B, T, C = 2, 8, 32          # batch, seq, embed_dim (H = 4C = 128)
    n_layer, layer_id = 4, 1

    key = jax.random.PRNGKey(0)
    k_x, k_p = jax.random.split(key)
    x = jax.random.normal(k_x, (B, T, C), dtype=jnp.float32)
    x_k, w_k, w_v = make_params(C, n_layer, layer_id, k_p)

    out = channel_mix(x, x_k, w_k, w_v)
    out = jax.block_until_ready(out)

    ref = channel_mix_ref(x, x_k, w_k, w_v)
    assert out.shape == (B, T, C)
    # bf16 operands in the kernel vs f32 reference -> loosened tolerance.
    assert jnp.allclose(out, ref, atol=2e-2, rtol=2e-2), "mismatch vs reference"

    print("KERNEL_OK")
</pallas_src>

<mosaic_0001>
module attributes {stable_mosaic.version = 11 : i64} {
  func.func @channel_mix_kernel(%arg0: i32, %arg1: i32, %arg2: memref<16x32xf32, #tpu.memory_space<vmem>>, %arg3: memref<16x32xf32, #tpu.memory_space<vmem>>, %arg4: memref<1x32xf32, #tpu.memory_space<vmem>>, %arg5: memref<32x128xbf16, #tpu.memory_space<vmem>>, %arg6: memref<128x32xbf16, #tpu.memory_space<vmem>>, %arg7: memref<16x32xf32, #tpu.memory_space<vmem>>, %arg8: memref<16x32xbf16, #tpu.memory_space<vmem>>, %arg9: memref<16x32xf32, #tpu.memory_space<vmem>>) attributes {dimension_semantics = [#tpu.dimension_semantics<parallel>, #tpu.dimension_semantics<arbitrary>], iteration_bounds = array<i64: 1, 1>, scalar_prefetch = 0 : i64, scratch_operands = 2 : i64, tpu.core_type = #tpu.core_type<tc>, window_params = [{transform_indices = @transform_0, window_bounds = array<i64: 16, 32>}, {transform_indices = @transform_1, window_bounds = array<i64: 16, 32>}, {pipeline_mode = #tpu.pipeline_mode<synchronous>, transform_indices = @transform_2, window_bounds = array<i64: 1, 32>}, {transform_indices = @transform_3, window_bounds = array<i64: 32, 128>}, {transform_indices = @transform_4, window_bounds = array<i64: 128, 32>}, {transform_indices = @transform_5, window_bounds = array<i64: 16, 32>}]} {
    %c0_i32 = arith.constant 0 : i32
    %0 = arith.cmpi eq, %arg1, %c0_i32 : i32
    %1 = arith.extui %0 : i1 to i32
    %c0_i32_0 = arith.constant 0 : i32
    %2 = arith.cmpi ne, %1, %c0_i32_0 : i32
    scf.if %2 {
      %c0_14 = arith.constant 0 : index
      %c0_15 = arith.constant 0 : index
      %18 = vector.load %arg2[%c0_14, %c0_15] : memref<16x32xf32, #tpu.memory_space<vmem>>, vector<16x32xf32>
      %c0_16 = arith.constant 0 : index
      %c0_17 = arith.constant 0 : index
      %19 = vector.load %arg3[%c0_16, %c0_17] : memref<16x32xf32, #tpu.memory_space<vmem>>, vector<16x32xf32>
      %c0_18 = arith.constant 0 : index
      %c0_19 = arith.constant 0 : index
      %20 = vector.load %arg4[%c0_18, %c0_19] : memref<1x32xf32, #tpu.memory_space<vmem>>, vector<1x32xf32>
      %21 = arith.subf %19, %18 : vector<16x32xf32>
      %22 = vector.broadcast %20 : vector<1x32xf32> to vector<16x32xf32>
      %23 = arith.mulf %21, %22 : vector<16x32xf32>
      %24 = arith.addf %18, %23 : vector<16x32xf32>
      %25 = arith.truncf %24 : vector<16x32xf32> to vector<16x32xbf16>
      %c0_20 = arith.constant 0 : index
      %c0_21 = arith.constant 0 : index
      %26 = vector.load %arg8[%c0_20, %c0_21] : memref<16x32xbf16, #tpu.memory_space<vmem>>, vector<16x32xbf16>
      tpu.vector_store %arg8[%c0_20, %c0_21], %25 {strides = array<i32>} : memref<16x32xbf16, #tpu.memory_space<vmem>>, vector<16x32xbf16>,
      %cst_22 = arith.constant 0.000000e+00 : f32
      %27 = vector.broadcast %cst_22 : f32 to vector<16x32xf32>
      %c0_23 = arith.constant 0 : index
      %c0_24 = arith.constant 0 : index
      %28 = vector.load %arg9[%c0_23, %c0_24] : memref<16x32xf32, #tpu.memory_space<vmem>>, vector<16x32xf32>
      tpu.vector_store %arg9[%c0_23, %c0_24], %27 {strides = array<i32>} : memref<16x32xf32, #tpu.memory_space<vmem>>, vector<16x32xf32>,
    } else {
    }
    %c0 = arith.constant 0 : index
    %c0_1 = arith.constant 0 : index
    %3 = vector.load %arg8[%c0, %c0_1] : memref<16x32xbf16, #tpu.memory_space<vmem>>, vector<16x32xbf16>
    %c0_2 = arith.constant 0 : index
    %c0_3 = arith.constant 0 : index
    %4 = vector.load %arg5[%c0_2, %c0_3] : memref<32x128xbf16, #tpu.memory_space<vmem>>, vector<32x128xbf16>
    %cst = arith.constant dense<0.000000e+00> : vector<16x128xf32>
    %5 = tpu.matmul %3, %4, %cst {dimension_numbers = #tpu.dot_dimension_numbers<[1], [0], [0], [1], [0, 0, 1, 1], [], []>} : vector<16x32xbf16>, vector<32x128xbf16>, vector<16x128xf32> -> vector<16x128xf32>
    %cst_4 = arith.constant 0.000000e+00 : f32
    %6 = vector.broadcast %cst_4 : f32 to vector<16x128xf32>
    %7 = arith.maximumf %5, %6 : vector<16x128xf32>
    %8 = arith.mulf %7, %7 : vector<16x128xf32>
    %c0_5 = arith.constant 0 : index
    %c0_6 = arith.constant 0 : index
    %9 = vector.load %arg9[%c0_5, %c0_6] : memref<16x32xf32, #tpu.memory_space<vmem>>, vector<16x32xf32>
    %10 = arith.truncf %8 : vector<16x128xf32> to vector<16x128xbf16>
    %c0_7 = arith.constant 0 : index
    %c0_8 = arith.constant 0 : index
    %11 = vector.load %arg6[%c0_7, %c0_8] : memref<128x32xbf16, #tpu.memory_space<vmem>>, vector<128x32xbf16>
    %cst_9 = arith.constant dense<0.000000e+00> : vector<16x32xf32>
    %12 = tpu.matmul %10, %11, %cst_9 {dimension_numbers = #tpu.dot_dimension_numbers<[1], [0], [0], [1], [0, 0, 1, 1], [], []>} : vector<16x128xbf16>, vector<128x32xbf16>, vector<16x32xf32> -> vector<16x32xf32>
    %13 = arith.addf %9, %12 : vector<16x32xf32>
    %c0_10 = arith.constant 0 : index
    %c0_11 = arith.constant 0 : index
    %14 = vector.load %arg9[%c0_10, %c0_11] : memref<16x32xf32, #tpu.memory_space<vmem>>, vector<16x32xf32>
    tpu.vector_store %arg9[%c0_10, %c0_11], %13 {strides = array<i32>} : memref<16x32xf32, #tpu.memory_space<vmem>>, vector<16x32xf32>,
    %c0_i32_12 = arith.constant 0 : i32
    %15 = arith.cmpi eq, %arg1, %c0_i32_12 : i32
    %16 = arith.extui %15 : i1 to i32
    %c0_i32_13 = arith.constant 0 : i32
    %17 = arith.cmpi ne, %16, %c0_i32_13 : i32
    scf.if %17 {
      %c0_14 = arith.constant 0 : index
      %c0_15 = arith.constant 0 : index
      %18 = vector.load %arg9[%c0_14, %c0_15] : memref<16x32xf32, #tpu.memory_space<vmem>>, vector<16x32xf32>
      %c0_16 = arith.constant 0 : index
      %c0_17 = arith.constant 0 : index
      %19 = vector.load %arg7[%c0_16, %c0_17] : memref<16x32xf32, #tpu.memory_space<vmem>>, vector<16x32xf32>
      tpu.vector_store %arg7[%c0_16, %c0_17], %18 {strides = array<i32>} : memref<16x32xf32, #tpu.memory_space<vmem>>, vector<16x32xf32>,
    } else {
    }
    return
  }
  func.func @transform_0(%arg0: i32, %arg1: i32) -> (i32, i32) {
    %c0_i32 = arith.constant 0 : i32
    %c0_i32_0 = arith.constant 0 : i32
    return %arg0, %c0_i32 : i32, i32
  }
  func.func @transform_1(%arg0: i32, %arg1: i32) -> (i32, i32) {
    %c0_i32 = arith.constant 0 : i32
    %c0_i32_0 = arith.constant 0 : i32
    return %arg0, %c0_i32 : i32, i32
  }
  func.func @transform_2(%arg0: i32, %arg1: i32) -> (i32, i32) {
    %c0_i32 = arith.constant 0 : i32
    %c0_i32_0 = arith.constant 0 : i32
    %c0_i32_1 = arith.constant 0 : i32
    return %c0_i32, %c0_i32_0 : i32, i32
  }
  func.func @transform_3(%arg0: i32, %arg1: i32) -> (i32, i32) {
    %c0_i32 = arith.constant 0 : i32
    %c0_i32_0 = arith.constant 0 : i32
    return %c0_i32, %arg1 : i32, i32
  }
  func.func @transform_4(%arg0: i32, %arg1: i32) -> (i32, i32) {
    %c0_i32 = arith.constant 0 : i32
    %c0_i32_0 = arith.constant 0 : i32
    return %arg1, %c0_i32 : i32, i32
  }
  func.func @transform_5(%arg0: i32, %arg1: i32) -> (i32, i32) {
    %c0_i32 = arith.constant 0 : i32
    %c0_i32_0 = arith.constant 0 : i32
    return %arg0, %c0_i32 : i32, i32
  }
}

</mosaic_0001>

<llo_original>
// kernel: tpu_custom_call.1
$region0: #{tpu_custom_call.1}
  #allocation0 [shape = 'u32[]', space=smem, size = 0x4, offset = 0x4, fixed_abs, tag = 'smem constant byte address 0x4 - core index']
  #allocation1 [shape = 'u32[144,128]{1,0:T(1,128)}', space=vmem, size = 0x12000, scoped, tag = 'internal scratch']
  #allocation2 [shape = 'bf16[16,32]{1,0:T(8,128)(2,1)}', space=vmem, size = 0x1000, scoped, tag = 'scratch operand']
  #allocation3 [shape = 'f32[16,32]{1,0:T(8,128)}', space=vmem, size = 0x2000, scoped, tag = 'scratch operand']
  %s0 = inlined_call_operand.vmem [shape: f32[16,32], index: 0, kind: input, shape index: {}]
  %s1 = inlined_call_operand.vmem [shape: f32[16,32], index: 1, kind: input, shape index: {}]
  %s2 = inlined_call_operand.vmem [shape: f32[1,32], index: 2, kind: input, shape index: {}]
  %s3 = inlined_call_operand.vmem [shape: bf16[32,128], index: 3, kind: input, shape index: {}]
  %s4 = inlined_call_operand.vmem [shape: bf16[128,32], index: 4, kind: input, shape index: {}]
  %s5 = inlined_call_operand.hbm [shape: f32[16,32], index: 5, kind: output, shape index: {}]
  %s6 = sld [smem:[#allocation0]]
  $region38: #{tpu_custom_call.1} parent=0
    _
  %s8 = ssub.s32 1, %s6
  %s9 = scalar_select 0, %s8, %s6
  $region1: #{tpu_custom_call.1} parent=0
    #allocation4 [shape = 'u8[8192]{0}', space=vmem, size = 0x2000, scoped, tag = 'output window, operand 0, single buffered']
    #allocation5 [shape = 's32[1]{0}', space=sflag, size = 0x4, scoped, tag = 'scoped memory for tpu_custom_call.1']
    %10 = vsyncpa [#allocation5], 0
    // Predicated region
    $region2: #{tpu_custom_call.1} parent=1 // pred_check
      _
    $region3: #{tpu_custom_call.1} parent=1 // pred_check_branch
      %12 = sbr.rel (0) target = $region5
    $region4: #{tpu_custom_call.1} parent=1 // pred_region
      _
    $region5: #{tpu_custom_call.1} parent=1 // pred_fallthru
      _
    // Predicated region
    $region6: #{tpu_custom_call.1} parent=1 // pred_check
      _
    $region7: #{tpu_custom_call.1} parent=1 // pred_check_branch
      %14 = sbr.rel (0) target = $region9
    $region8: #{tpu_custom_call.1} parent=1 // pred_region
      _
    $region9: #{tpu_custom_call.1} parent=1 // pred_fallthru
      _
    // Predicated region
    $region10: #{tpu_custom_call.1} parent=1 // pred_check
      _
    $region11: #{tpu_custom_call.1} parent=1 // pred_check_branch
      %16 = sbr.rel (0) target = $region13
    $region12: #{tpu_custom_call.1} parent=1 // pred_region
      _
    $region13: #{tpu_custom_call.1} parent=1 // pred_fallthru
      _
    // Predicated region
    $region14: #{tpu_custom_call.1} parent=1 // pred_check
      _
    $region15: #{tpu_custom_call.1} parent=1 // pred_check_branch
      %18 = sbr.rel (0) target = $region17
    $region16: #{tpu_custom_call.1} parent=1 // pred_region
      _
    $region17: #{tpu_custom_call.1} parent=1 // pred_fallthru
      _
    // Predicated region
    $region18: #{tpu_custom_call.1} parent=1 // pred_check
      _
    $region19: #{tpu_custom_call.1} parent=1 // pred_check_branch
      %20 = sbr.rel (0) target = $region21
    $region20: #{tpu_custom_call.1} parent=1 // pred_region
      _
    $region21: #{tpu_custom_call.1} parent=1 // pred_fallthru
      _
    %p22 = scmp.eq.s32.totalorder 0, 0
    // Predicated region
    $region22: #{tpu_custom_call.1} parent=1 // pred_check
      %p23 = pneg %p22
    $region23: #{tpu_custom_call.1} parent=1 // pred_check_branch
      %25 = sbr.rel (%p23) target = $region25
    $region24: #{tpu_custom_call.1} parent=1 // pred_region
      %v26 = vld [vmem:[%s0] sm:$0xff]
      %v27 = vld [vmem:[%s0 + $0x8] sm:$0xff]
      %v28 = vld [vmem:[%s1] sm:$0xff]
      %v29 = vld [vmem:[%s1 + $0x8] sm:$0xff]
      %v30 = vld [vmem:[%s2] sm:$0x1]
      %v31 = vsub.f32 %v28, %v26
      %v32 = vsub.f32 %v29, %v27
      %v34 = vlaneseq
      %v35 = vshrl.u32 %v34, 7
      %v36 = vsub.s32 0, %v35
      %v37 = vrot.slane %v30, %v36
      %v39 = vmul.f32 %v31, %v37
      %v40 = vmul.f32 %v32, %v37
      %v41 = vadd.f32 %v26, %v39
      %v42 = vadd.f32 %v27, %v40
      %v43 = vpack.c.bf16 %v42, %v41
      %v45 = vunpack.c.l.b16 %v43
      %v46 = vunpack.c.h.b16 %v43
      %v47 = vpack.c.b16 %v45, %v45
      %v48 = vpack.c.b16 %v46, %v46
      %vm51 = vcmask 257024
      %52 = vst.msk [vmem:[#allocation2] sm:$0xf] %vm51, %v47
      %53 = vst.msk [vmem:[#allocation2 + $0x4] sm:$0xf] %vm51, %v48
      %vm54 = vcmask 261120
      %55 = vst.msk [vmem:[#allocation3] sm:$0xff] %vm54, 0.0
      %56 = vst.msk [vmem:[#allocation3 + $0x8] sm:$0xff] %vm54, 0.0
    $region25: #{tpu_custom_call.1} parent=1 // pred_fallthru
      _
    %v57 = vld [vmem:[#allocation2] sm:$0xf]
    %v58 = vld [vmem:[#allocation2 + $0x4] sm:$0xf]
    %v59 = vld [vmem:[%s3] sm:$0xf]
    %v60 = vld [vmem:[%s3 + $0x4] sm:$0xf]
    %v61 = vld [vmem:[%s3 + $0x8] sm:$0xf]
    %v62 = vld [vmem:[%s3 + $0xc] sm:$0xf]
    %v65 = vunpack.c.l.b16 %v57
    %v66 = vunpack.c.l.b16 %v58
    %v67 = vpack.c.b16 %v66, %v65
    %v72 = vunpack.c.l.b16 %v59
    %v73 = vunpack.c.l.b16 %v60
    %v74 = vunpack.c.l.b16 %v61
    %v75 = vunpack.c.l.b16 %v62
    %v76 = vpack.c.b16 %v73, %v72
    %v77 = vpack.c.b16 %v75, %v74
    %vm80 = vcmask 261120
    %v82 = vsel %vm80, %v67, 0
    %84 = vmatprep.subr.bf16.mxu0 0
    %85 = vmatpush1.bf16.msra.mxu0 0
    %86 = vmatprep.subr.bf16.mxu0 0
    %87 = vmatpush1.bf16.msra.mxu0 0
    %88 = vmatprep.subr.bf16.mxu0 0
    %89 = vmatpush1.bf16.msra.mxu0 0
    %90 = vmatprep.subr.bf16.mxu0 0
    %91 = vmatpush1.bf16.msra.mxu0 0
    %92 = vmatprep.subr.bf16.mxu0 0
    %93 = vmatpush1.bf16.msra.mxu0 0
    %94 = vmatprep.subr.bf16.mxu0 0
    %95 = vmatpush1.bf16.msra.mxu0 0
    %96 = vmatprep.subr.bf16.mxu0 0
    %97 = vmatpush1.bf16.msra.mxu0 %v77
    %98 = vmatprep.subr.bf16.mxu0 0
    %99 = vmatpush1.bf16.msra.mxu0 %v76
    %100 = vmatprep.subr.bf16.mxu0 0
    %101 = vmatpush2.bf16.msra.mxu0 0
    %102 = vmatprep.subr.bf16.mxu0 0
    %103 = vmatpush2.bf16.msra.mxu0 0
    %104 = vmatprep.subr.bf16.mxu0 0
    %105 = vmatpush2.bf16.msra.mxu0 0
    %106 = vmatprep.subr.bf16.mxu0 0
    %107 = vmatpush2.bf16.msra.mxu0 0
    %108 = vmatprep.subr.bf16.mxu0 0
    %109 = vmatpush2.bf16.msra.mxu0 0
    %110 = vmatprep.subr.bf16.mxu0 0
    %111 = vmatpush2.bf16.msra.mxu0 0
    %112 = vmatprep.subr.bf16.mxu0 0
    %113 = vmatpush2.bf16.msra.mxu0 0
    %114 = vmatprep.subr.bf16.mxu0 0
    %115 = vmatpush2.bf16.msra.mxu0 0
    %116 = vmatprep.mubr.bf16.mxu0 0
    %117 = vmatmul.mubr.bf16.gmra.mxu0 %v82
    %v118 = vpop.f32.mrf.mxu0
    %v119 = vadd.f32 0.0, %v118
    %v120 = vpop.f32.mrf.mxu0
    %v121 = vpop.f32.mrf.mxu0
    %v122 = vadd.f32 0.0, %v121
    %v123 = vpop.f32.mrf.mxu0
    %124 = vdwg.mxu0
    %v125 = vmax.f32 %v119, 0.0
    %v126 = vmax.f32 %v122, 0.0
    %v127 = vmul.f32 %v125, %v125
    %v128 = vmul.f32 %v126, %v126
    %v129 = vld [vmem:[#allocation3] sm:$0xff]
    %v130 = vld [vmem:[#allocation3 + $0x8] sm:$0xff]
    %v131 = vpack.c.bf16 %v128, %v127
    %v132 = vld [vmem:[%s4] sm:$0xf]
    %v133 = vld [vmem:[%s4 + $0x4] sm:$0xf]
    %v134 = vld [vmem:[%s4 + $0x8] sm:$0xf]
    %v135 = vld [vmem:[%s4 + $0xc] sm:$0xf]
    %v136 = vld [vmem:[%s4 + $0x10] sm:$0xf]
    %v137 = vld [vmem:[%s4 + $0x14] sm:$0xf]
    %v138 = vld [vmem:[%s4 + $0x18] sm:$0xf]
    %v139 = vld [vmem:[%s4 + $0x1c] sm:$0xf]
    %v140 = vld [vmem:[%s4 + $0x20] sm:$0xf]
    %v141 = vld [vmem:[%s4 + $0x24] sm:$0xf]
    %v142 = vld [vmem:[%s4 + $0x28] sm:$0xf]
    %v143 = vld [vmem:[%s4 + $0x2c] sm:$0xf]
    %v144 = vld [vmem:[%s4 + $0x30] sm:$0xf]
    %v145 = vld [vmem:[%s4 + $0x34] sm:$0xf]
    %v146 = vld [vmem:[%s4 + $0x38] sm:$0xf]
    %v147 = vld [vmem:[%s4 + $0x3c] sm:$0xf]
    %v164 = vunpack.c.l.b16 %v132
    %v165 = vunpack.c.l.b16 %v133
    %v166 = vunpack.c.l.b16 %v134
    %v167 = vunpack.c.l.b16 %v135
    %v168 = vunpack.c.l.b16 %v136
    %v169 = vunpack.c.l.b16 %v137
    %v170 = vunpack.c.l.b16 %v138
    %v171 = vunpack.c.l.b16 %v139
    %v172 = vunpack.c.l.b16 %v140
    %v173 = vunpack.c.l.b16 %v141
    %v174 = vunpack.c.l.b16 %v142
    %v175 = vunpack.c.l.b16 %v143
    %v176 = vunpack.c.l.b16 %v144
    %v177 = vunpack.c.l.b16 %v145
    %v178 = vunpack.c.l.b16 %v146
    %v179 = vunpack.c.l.b16 %v147
    %v180 = vpack.c.b16 %v165, %v164
    %v181 = vpack.c.b16 %v167, %v166
    %v182 = vpack.c.b16 %v169, %v168
    %v183 = vpack.c.b16 %v171, %v170
    %v184 = vpack.c.b16 %v173, %v172
    %v185 = vpack.c.b16 %v175, %v174
    %v186 = vpack.c.b16 %v177, %v176
    %v187 = vpack.c.b16 %v179, %v178
    %196 = vmatprep.subr.bf16.mxu0 0
    %197 = vmatpush1.bf16.msra.mxu0 %v187
    %198 = vmatprep.subr.bf16.mxu0 0
    %199 = vmatpush1.bf16.msra.mxu0 %v186
    %200 = vmatprep.subr.bf16.mxu0 0
    %201 = vmatpush1.bf16.msra.mxu0 %v185
    %202 = vmatprep.subr.bf16.mxu0 0
    %203 = vmatpush1.bf16.msra.mxu0 %v184
    %204 = vmatprep.subr.bf16.mxu0 0
    %205 = vmatpush1.bf16.msra.mxu0 %v183
    %206 = vmatprep.subr.bf16.mxu0 0
    %207 = vmatpush1.bf16.msra.mxu0 %v182
    %208 = vmatprep.subr.bf16.mxu0 0
    %209 = vmatpush1.bf16.msra.mxu0 %v181
    %210 = vmatprep.subr.bf16.mxu0 0
    %211 = vmatpush1.bf16.msra.mxu0 %v180
    %212 = vmatprep.subr.bf16.mxu0 0
    %213 = vmatpush2.bf16.msra.mxu0 0
    %214 = vmatprep.subr.bf16.mxu0 0
    %215 = vmatpush2.bf16.msra.mxu0 0
    %216 = vmatprep.subr.bf16.mxu0 0
    %217 = vmatpush2.bf16.msra.mxu0 0
    %218 = vmatprep.subr.bf16.mxu0 0
    %219 = vmatpush2.bf16.msra.mxu0 0
    %220 = vmatprep.subr.bf16.mxu0 0
    %221 = vmatpush2.bf16.msra.mxu0 0
    %222 = vmatprep.subr.bf16.mxu0 0
    %223 = vmatpush2.bf16.msra.mxu0 0
    %224 = vmatprep.subr.bf16.mxu0 0
    %225 = vmatpush2.bf16.msra.mxu0 0
    %226 = vmatprep.subr.bf16.mxu0 0
    %227 = vmatpush2.bf16.msra.mxu0 0
    %228 = vmatprep.mubr.bf16.mxu0 0
    %229 = vmatmul.mubr.bf16.gmra.mxu0 %v131
    %v230 = vpop.f32.mrf.mxu0
    %v231 = vadd.f32 0.0, %v230
    %v232 = vpop.f32.mrf.mxu0
    %v233 = vpop.f32.mrf.mxu0
    %v234 = vadd.f32 0.0, %v233
    %v235 = vpop.f32.mrf.mxu0
    %236 = vdwg.mxu0
    %v237 = vadd.f32 %v129, %v231
    %v238 = vadd.f32 %v130, %v234
    %239 = vst.msk [vmem:[#allocation3] sm:$0xff] %vm80, %v237
    %240 = vst.msk [vmem:[#allocation3 + $0x8] sm:$0xff] %vm80, %v238
    // Predicated region
    $region26: #{tpu_custom_call.1} parent=1 // pred_check
      %p241 = pneg %p22
    $region27: #{tpu_custom_call.1} parent=1 // pred_check_branch
      %243 = sbr.rel (%p241) target = $region29
    $region28: #{tpu_custom_call.1} parent=1 // pred_region
      %v244 = vld [vmem:[#allocation3] sm:$0xff]
      %v245 = vld [vmem:[#allocation3 + $0x8] sm:$0xff]
      %246 = vst.msk [vmem:[#allocation4] sm:$0xff] %vm80, %v244
      %247 = vst.msk [vmem:[#allocation4 + $0x8] sm:$0xff] %vm80, %v245
    $region29: #{tpu_custom_call.1} parent=1 // pred_fallthru
      _
    // Predicated region
    $region30: #{tpu_custom_call.1} parent=1 // pred_check
      _
    $region31: #{tpu_custom_call.1} parent=1 // pred_check_branch
      %249 = sbr.rel (0) target = $region33
    $region32: #{tpu_custom_call.1} parent=1 // pred_region
      %s251 = ssub.s32 256, 256
      %252 = vsyncadd [#allocation5], %s251
      %s253 = sshll.u32 [#allocation4], 4
      %s254 = int_to_ptr.vmem [resolvable:$true] %s253
      %259 = dma.vmem_to_hbm [thread:$0]  %s254, 256, %s5, [#allocation5], 128, 128, 8
    $region33: #{tpu_custom_call.1} parent=1 // pred_fallthru
      _
    // Predicated region
    $region34: #{tpu_custom_call.1} parent=1 // pred_check
      _
    $region35: #{tpu_custom_call.1} parent=1 // pred_check_branch
      %261 = sbr.rel (0) target = $region37
    $region36: #{tpu_custom_call.1} parent=1 // pred_region
      %262 = dma.done [#allocation5], 256
    $region37: #{tpu_custom_call.1} parent=1 // pred_fallthru
      _
    %263 = vsyncpa [#allocation5], 1

</llo_original>
